<compile_context>
chip_gen: v5e
topology: v5e:2x2
jax: 0.10.0
libtpu: 0.0.40
codegen_flags: <defaults>
</compile_context>

<pallas_src>
import jax
import jax.numpy as jnp
import numpy as np
from jax.experimental import pallas as pl
from jax.experimental.pallas import tpu as pltpu


def pos_emb_kernel(x_ref, emb_ref, o_ref):
    # x_ref / o_ref: (1, ct, H, W); emb_ref: (ct, H, W) — broadcast over the unit batch dim.
    res = x_ref[...] + emb_ref[...]
    o_ref[...] = res.astype(o_ref.dtype)  # no-op when dtypes already match


def _vmem_capacity_bytes():
    """Per-core VMEM capacity; conservative fallback (v7x = 64 MiB) if the query fails."""
    try:
        cap = int(pltpu.get_tpu_info().vmem_capacity_bytes)
        if cap > 0:
            return cap
    except Exception:
        pass
    return 64 * 1024 * 1024


def _pick_channel_tile(c, h, w, x_itemsize, emb_itemsize, block_budget_bytes):
    """Largest channel tile whose double-buffered (x, emb, out) block set fits the budget."""
    per_channel = 2 * h * w * (2 * x_itemsize + emb_itemsize)  # x + out (x dtype) + emb, x2 buffers
    ct = max(1, block_budget_bytes // per_channel)
    return int(min(c, ct))


def position_embedding(x, emb):
    B, C, H, W = x.shape
    assert emb.shape == (C, H, W)

    vmem_cap = _vmem_capacity_bytes()
    block_budget = vmem_cap // 2           # bytes allowed for the pipelined block set
    vmem_limit = vmem_cap * 3 // 4         # scoped-VMEM limit handed to the compiler

    ct = _pick_channel_tile(
        C, H, W,
        jnp.dtype(x.dtype).itemsize,
        jnp.dtype(emb.dtype).itemsize,
        block_budget,
    )
    n_ct = pl.cdiv(C, ct)                  # partial last tile is fine for an elementwise add
    grid = (n_ct, B)                       # batch innermost -> emb tile fetched once per channel tile

    x_spec = pl.BlockSpec((1, ct, H, W), lambda c, b: (b, c, 0, 0))
    emb_spec = pl.BlockSpec((ct, H, W), lambda c, b: (c, 0, 0))   # independent of b -> no re-DMA across batch

    # Keep a >=2-extent axis parallel so both v7x TensorCores are used.
    if n_ct >= 2:
        dims = ("parallel", "arbitrary")
    elif B >= 2:
        dims = ("arbitrary", "parallel")
    else:
        dims = ("arbitrary", "arbitrary")

    return pl.pallas_call(
        pos_emb_kernel,
        out_shape=jax.ShapeDtypeStruct((B, C, H, W), x.dtype),
        grid=grid,
        in_specs=[x_spec, emb_spec],
        out_specs=x_spec,
        compiler_params=pltpu.CompilerParams(
            dimension_semantics=dims,
            vmem_limit_bytes=int(vmem_limit),
        ),
    )(x, emb)


def reference_position_embedding(x, emb):
    """Pure-JAX reference mirroring the PyTorch module: x + embedding (broadcast over batch)."""
    return x + emb[None]


if __name__ == "__main__":
    # Module fixes the spatial size at 128x128: embedding is (d_model, 128, 128).
    B, d_model, H, W = 2, 4, 128, 128

    key = jax.random.PRNGKey(0)
    k_emb, k_x = jax.random.split(key, 2)

    # torch.normal(0, 0.01, (d_model, 128, 128))
    emb = jax.random.normal(k_emb, (d_model, H, W), jnp.float32) * 0.01
    x = jax.random.normal(k_x, (B, d_model, H, W), jnp.float32)

    out = position_embedding(x, emb)
    out = jax.block_until_ready(out)

    ref = reference_position_embedding(x, emb)
    np.testing.assert_allclose(np.asarray(out), np.asarray(ref), rtol=1e-6, atol=1e-6)

    print("KERNEL_OK")
</pallas_src>

<mosaic_0001>
module attributes {stable_mosaic.version = 11 : i64} {
  func.func @pos_emb_kernel(%arg0: i32, %arg1: i32, %arg2: memref<1x4x128x128xf32, #tpu.memory_space<vmem>>, %arg3: memref<4x128x128xf32, #tpu.memory_space<vmem>>, %arg4: memref<1x4x128x128xf32, #tpu.memory_space<vmem>>) attributes {dimension_semantics = [#tpu.dimension_semantics<arbitrary>, #tpu.dimension_semantics<parallel>], iteration_bounds = array<i64: 1, 2>, scalar_prefetch = 0 : i64, scratch_operands = 0 : i64, tpu.core_type = #tpu.core_type<tc>, window_params = [{transform_indices = @transform_0, window_bounds = array<i64: 1, 4, 128, 128>}, {transform_indices = @transform_1, window_bounds = array<i64: 4, 128, 128>}, {transform_indices = @transform_2, window_bounds = array<i64: 1, 4, 128, 128>}]} {
    %c0 = arith.constant 0 : index
    %c0_0 = arith.constant 0 : index
    %c0_1 = arith.constant 0 : index
    %c0_2 = arith.constant 0 : index
    %0 = vector.load %arg2[%c0, %c0_0, %c0_1, %c0_2] : memref<1x4x128x128xf32, #tpu.memory_space<vmem>>, vector<1x4x128x128xf32>
    %c0_3 = arith.constant 0 : index
    %c0_4 = arith.constant 0 : index
    %c0_5 = arith.constant 0 : index
    %1 = vector.load %arg3[%c0_3, %c0_4, %c0_5] : memref<4x128x128xf32, #tpu.memory_space<vmem>>, vector<4x128x128xf32>
    %2 = vector.shape_cast %1 : vector<4x128x128xf32> to vector<1x4x128x128xf32>
    %3 = arith.addf %0, %2 : vector<1x4x128x128xf32>
    %c0_6 = arith.constant 0 : index
    %c0_7 = arith.constant 0 : index
    %c0_8 = arith.constant 0 : index
    %c0_9 = arith.constant 0 : index
    %4 = vector.load %arg4[%c0_6, %c0_7, %c0_8, %c0_9] : memref<1x4x128x128xf32, #tpu.memory_space<vmem>>, vector<1x4x128x128xf32>
    tpu.vector_store %arg4[%c0_6, %c0_7, %c0_8, %c0_9], %3 {strides = array<i32>} : memref<1x4x128x128xf32, #tpu.memory_space<vmem>>, vector<1x4x128x128xf32>,
    return
  }
  func.func @transform_0(%arg0: i32, %arg1: i32) -> (i32, i32, i32, i32) {
    %c0_i32 = arith.constant 0 : i32
    %c0_i32_0 = arith.constant 0 : i32
    %c0_i32_1 = arith.constant 0 : i32
    return %arg1, %arg0, %c0_i32, %c0_i32_0 : i32, i32, i32, i32
  }
  func.func @transform_1(%arg0: i32, %arg1: i32) -> (i32, i32, i32) {
    %c0_i32 = arith.constant 0 : i32
    %c0_i32_0 = arith.constant 0 : i32
    %c0_i32_1 = arith.constant 0 : i32
    return %arg0, %c0_i32, %c0_i32_0 : i32, i32, i32
  }
  func.func @transform_2(%arg0: i32, %arg1: i32) -> (i32, i32, i32, i32) {
    %c0_i32 = arith.constant 0 : i32
    %c0_i32_0 = arith.constant 0 : i32
    %c0_i32_1 = arith.constant 0 : i32
    return %arg1, %arg0, %c0_i32, %c0_i32_0 : i32, i32, i32, i32
  }
}

</mosaic_0001>

<llo_original>
// kernel: tpu_custom_call.1
$region0: #{tpu_custom_call.1}
  #allocation0 [shape = 'u32[]', space=smem, size = 0x4, offset = 0x4, fixed_abs, tag = 'smem constant byte address 0x4 - core index']
  #allocation1 [shape = 'u32[72,128]{1,0:T(1,128)}', space=vmem, size = 0x9000, scoped, tag = 'internal scratch']
  %s0 = inlined_call_operand.hbm [shape: f32[2,4,128,128], index: 0, kind: input, shape index: {}]
  %s1 = inlined_call_operand.hbm [shape: f32[4,128,128], index: 1, kind: input, shape index: {}]
  %s2 = inlined_call_operand.hbm [shape: f32[2,4,128,128], index: 2, kind: output, shape index: {}]
  %s3 = sld [smem:[#allocation0]]
  $region49: #{tpu_custom_call.1} parent=0
    _
  %s5 = ssub.s32 1, %s3
  %s6 = scalar_select 0, %s5, %s3
  $region1: #{tpu_custom_call.1} parent=0
    #allocation2 [shape = 'u8[524288]{0}', space=vmem, size = 0x80000, scoped, tag = 'input window, operand 0']
    #allocation3 [shape = 's32[2]{0}', space=sflag, size = 0x8, scoped, tag = 'scoped memory for tpu_custom_call.1']
    #allocation4 [shape = 's32[2]{0}', space=sflag, size = 0x8, scoped, tag = 'scoped memory for tpu_custom_call.1']
    #allocation5 [shape = 'u8[262144]{0}', space=vmem, size = 0x40000, scoped, tag = 'input window, operand 1, single buffered']
    #allocation6 [shape = 's32[1]{0}', space=sflag, size = 0x4, scoped, tag = 'scoped memory for tpu_custom_call.1']
    #allocation7 [shape = 'u8[524288]{0}', space=vmem, size = 0x80000, scoped, tag = 'output window, operand 0']
    %7 = vsyncpa [#allocation3], 0
    %s8 = scalar_lea.sflag [#allocation3], 1
    %9 = vsyncpa %s8, 0
    %10 = vsyncpa [#allocation6], 0
    %11 = vsyncpa [#allocation4], 0
    %s12 = scalar_lea.sflag [#allocation4], 1
    %13 = vsyncpa %s12, 0
    loop: start=0, step=1, limit=4
    $region2: #{tpu_custom_call.1} parent=1 // loop_pre_header
      _
    $region3: #{tpu_custom_call.1} parent=1 // loop_header
      %s15 = sphi 0, %s19
      %p16 = scmp.ge.s32.totalorder %s15, 4
      %s22 = sphi 0, %s34
      %s23 = sphi 0, %s30
      %s24 = sphi 0, %s22
      %s25 = sphi 0, %s23
      %s26 = sphi 0, %s24
      %s27 = sphi 0, %s25
      %s39 = sphi 0, %s41
      %s42 = sphi 0, %s39
      %s43 = sphi 0, %s42
      %s59 = sphi 0, %s43
      %s65 = sphi 0, %s67
      %s68 = sphi 0, %s65
      %s69 = sphi 0, %s68
      %s85 = sphi 0, %s69
      %s93 = sphi 0, %s95
      %s96 = sphi 0, %s93
      %s97 = sphi 0, %s96
      %s113 = sphi 0, %s97
    $region4: #{tpu_custom_call.1} parent=1 // loop_header_branch
      %18 = sbr.rel (%p16) target = $region8
    $region5: #{tpu_custom_call.1} parent=1 // loop_body
      %s20 = ssub.s32 %s15, 1
      %s21 = ssub.s32 %s15, 2
      %s28 = sadd.s32 1, %s23
      %p29 = scmp.ge.s32.totalorder %s28, 2
      %s30 = scalar_select %p29, 0, %s28
      %s31 = sadd.s32 1, %s22
      %s32 = scalar_select %p29, %s31, %s22
      %p33 = scmp.ge.s32.totalorder %s32, 1
      %s34 = scalar_select %p33, 0, %s32
      %s35 = ssub.s32 %s23, %s30
      %s36 = ssub.s32 %s22, %s34
      %s37 = sor.u32 %s35, %s36
      %p38 = scmp.eq.s32.totalorder %s37, 0
      %s40 = sadd.s32 %s39, 1
      %s41 = scalar_select %p38, %s39, %s40
      %p44 = pneg %p38
      %p45 = scmp.eq.s32.totalorder %s15, 1
      %p46 = por %p44, %p45
      %p47 = scmp.ne.s32.totalorder %s39, %s42
      %p48 = scmp.eq.s32.totalorder %s15, 0
      %p49 = por %p47, %p48
      %p50 = scmp.ne.s32.totalorder %s39, %s42
      %p51 = scmp.eq.s32.totalorder %s20, 1
      %p52 = por %p50, %p51
      %p53 = scmp.ne.s32.totalorder %s42, %s43
      %p54 = scmp.eq.s32.totalorder %s20, 0
      %p55 = por %p53, %p54
      %p56 = scmp.ne.s32.totalorder %s42, %s43
      %p57 = scmp.eq.s32.totalorder %s21, 1
      %p58 = por %p56, %p57
      %p60 = scmp.ne.s32.totalorder %s43, %s59
      %p61 = scmp.eq.s32.totalorder %s21, 0
      %p62 = por %p60, %p61
      %s63 = ssub.s32 %s22, %s34
      %p64 = scmp.eq.s32.totalorder %s63, 0
      %s66 = sadd.s32 %s65, 1
      %s67 = scalar_select %p64, %s65, %s66
      %p70 = pneg %p64
      %p71 = scmp.eq.s32.totalorder %s15, 1
      %p72 = por %p70, %p71
      %p73 = scmp.ne.s32.totalorder %s65, %s68
      %p74 = scmp.eq.s32.totalorder %s15, 0
      %p75 = por %p73, %p74
      %p76 = scmp.ne.s32.totalorder %s65, %s68
      %p77 = scmp.eq.s32.totalorder %s20, 1
      %p78 = por %p76, %p77
      %p79 = scmp.ne.s32.totalorder %s68, %s69
      %p80 = scmp.eq.s32.totalorder %s20, 0
      %p81 = por %p79, %p80
      %p82 = scmp.ne.s32.totalorder %s68, %s69
      %p83 = scmp.eq.s32.totalorder %s21, 1
      %p84 = por %p82, %p83
      %p86 = scmp.ne.s32.totalorder %s69, %s85
      %p87 = scmp.eq.s32.totalorder %s21, 0
      %p88 = por %p86, %p87
      %s89 = ssub.s32 %s23, %s30
      %s90 = ssub.s32 %s22, %s34
      %s91 = sor.u32 %s89, %s90
      %p92 = scmp.eq.s32.totalorder %s91, 0
      %s94 = sadd.s32 %s93, 1
      %s95 = scalar_select %p92, %s93, %s94
      %p98 = pneg %p92
      %p99 = scmp.eq.s32.totalorder %s15, 1
      %p100 = por %p98, %p99
      %p101 = scmp.ne.s32.totalorder %s93, %s96
      %p102 = scmp.eq.s32.totalorder %s15, 0
      %p103 = por %p101, %p102
      %p104 = scmp.ne.s32.totalorder %s93, %s96
      %p105 = scmp.eq.s32.totalorder %s20, 1
      %p106 = por %p104, %p105
      %p107 = scmp.ne.s32.totalorder %s96, %s97
      %p108 = scmp.eq.s32.totalorder %s20, 0
      %p109 = por %p107, %p108
      %p110 = scmp.ne.s32.totalorder %s96, %s97
      %p111 = scmp.eq.s32.totalorder %s21, 1
      %p112 = por %p110, %p111
      %p114 = scmp.ne.s32.totalorder %s97, %s113
      %p115 = scmp.eq.s32.totalorder %s21, 0
      %p116 = por %p114, %p115
      %p117 = scmp.le.s32.totalorder 1, %s15
      %p118 = scmp.lt.s32.totalorder %s15, 3
      %p119 = pnand %p117, %p118
      %p120 = pneg %p119
      // Predicated region
      $region9: #{tpu_custom_call.1} parent=5 // pred_check
        _
      $region10: #{tpu_custom_call.1} parent=5 // pred_check_branch
        %122 = sbr.rel (%p119) target = $region12
      $region11: #{tpu_custom_call.1} parent=5 // pred_region
        %s123 = ssub.s32 %s15, 1
        // Predicated region
        $region13: #{tpu_custom_call.1} parent=11 // pred_check
          %p124 = pneg %p81
        $region14: #{tpu_custom_call.1} parent=11 // pred_check_branch
          %126 = sbr.rel (%p124) target = $region16
        $region15: #{tpu_custom_call.1} parent=11 // pred_region
          %s127 = smul.u32 4, %s24
          %129 = vsyncadd [#allocation6], 0
          %s130 = smul.addr %s127, 16
          %s131 = smul.addr %s130, 8
          %s132 = scalar_lea.hbm %s1, %s131
          %s133 = sshll.u32 %s132, 4
          %s134 = int_to_ptr.hbm [resolvable:$true] %s133
          %s135 = sshll.u32 [#allocation5], 4
          %s136 = int_to_ptr.vmem [resolvable:$true] %s135
          %141 = dma.hbm_to_vmem [thread:$0]  %s134, 8192, %s136, [#allocation6], 128, 128, 8
        $region16: #{tpu_custom_call.1} parent=11 // pred_fallthru
          _
      $region12: #{tpu_custom_call.1} parent=5 // pred_fallthru
        _
      %p142 = scmp.lt.s32.totalorder %s15, 2
      // Predicated region
      $region17: #{tpu_custom_call.1} parent=5 // pred_check
        %p143 = pneg %p142
      $region18: #{tpu_custom_call.1} parent=5 // pred_check_branch
        %145 = sbr.rel (%p143) target = $region20
      $region19: #{tpu_custom_call.1} parent=5 // pred_region
        // Predicated region
        $region21: #{tpu_custom_call.1} parent=19 // pred_check
          %p146 = pneg %p49
        $region22: #{tpu_custom_call.1} parent=19 // pred_check_branch
          %148 = sbr.rel (%p146) target = $region24
        $region23: #{tpu_custom_call.1} parent=19 // pred_region
          %s149 = sand.u32 %s39, 1
          %s150 = scalar_lea.sflag [#allocation3], %s149
          %s151 = sand.u32 %s39, 1
          %s152 = smul.addr %s151, 512
          %s153 = scalar_lea.vmem [#allocation2], %s152
          %s154 = smul.u32 4, %s22
          %156 = vsyncadd %s150, 0
          %s157 = smul.addr %s154, 16
          %s158 = smul.addr %s23, 64
          %s159 = sadd.s32 %s157, %s158
          %s160 = smul.addr %s159, 8
          %s161 = scalar_lea.hbm %s0, %s160
          %s162 = sshll.u32 %s161, 4
          %s163 = int_to_ptr.hbm [resolvable:$true] %s162
          %s164 = sshll.u32 %s153, 4
          %s165 = int_to_ptr.vmem [resolvable:$true] %s164
          %170 = dma.hbm_to_vmem [thread:$0]  %s163, 8192, %s165, %s150, 128, 128, 8
        $region24: #{tpu_custom_call.1} parent=19 // pred_fallthru
          _
      $region20: #{tpu_custom_call.1} parent=5 // pred_fallthru
        _
      %p171 = scmp.le.s32.totalorder 1, %s15
      %p172 = scmp.lt.s32.totalorder %s15, 3
      %p173 = pnand %p171, %p172
      %p174 = pneg %p173
      // Predicated region
      $region25: #{tpu_custom_call.1} parent=5 // pred_check
        _
      $region26: #{tpu_custom_call.1} parent=5 // pred_check_branch
        %176 = sbr.rel (%p173) target = $region28
      $region27: #{tpu_custom_call.1} parent=5 // pred_region
        %s177 = ssub.s32 %s15, 1
        %s178 = sand.u32 %s42, 1
        %s179 = scalar_lea.sflag [#allocation3], %s178
        %s180 = sand.u32 %s42, 1
        %s181 = smul.addr %s180, 512
        %s182 = scalar_lea.vmem [#allocation2], %s181
        // Predicated region
        $region29: #{tpu_custom_call.1} parent=27 // pred_check
          %p183 = pneg %p55
        $region30: #{tpu_custom_call.1} parent=27 // pred_check_branch
          %185 = sbr.rel (%p183) target = $region32
        $region31: #{tpu_custom_call.1} parent=27 // pred_region
          %187 = dma.done %s179, 8192
        $region32: #{tpu_custom_call.1} parent=27 // pred_fallthru
          _
        // Predicated region
        $region33: #{tpu_custom_call.1} parent=27 // pred_check
          %p188 = pneg %p81
        $region34: #{tpu_custom_call.1} parent=27 // pred_check_branch
          %190 = sbr.rel (%p188) target = $region36
        $region35: #{tpu_custom_call.1} parent=27 // pred_region
          %192 = dma.done [#allocation6], 8192
        $region36: #{tpu_custom_call.1} parent=27 // pred_fallthru
          _
        %s193 = sand.u32 %s42, 1
        %s194 = scalar_lea.sflag [#allocation3], %s193
        %s195 = sand.u32 %s42, 1
        %s196 = smul.addr %s195, 512
        %s197 = scalar_lea.vmem [#allocation2], %s196
        %p198 = pneg %p55
        %p199 = pneg %p52
        %p200 = pneg %p81
        %p201 = pneg %p78
        %p202 = pneg %p109
        %p203 = pneg %p106
        %s204 = sand.u32 %s96, 1
        %s205 = scalar_lea.sflag [#allocation4], %s204
        %s206 = sand.u32 %s96, 1
        %s207 = smul.addr %s206, 512
        %s208 = scalar_lea.vmem [#allocation7], %s207
        %s209 = smul.u32 4, %s24
        %s210 = smul.u32 4, %s24
        %s211 = smul.u32 4, %s24
        %v212 = vld [vmem:[%s182] sm:$0xff]
        %v213 = vld [vmem:[%s182 + $0x8] sm:$0xff]
        %v214 = vld [vmem:[%s182 + $0x10] sm:$0xff]
        %v215 = vld [vmem:[%s182 + $0x18] sm:$0xff]
        %v216 = vld [vmem:[%s182 + $0x20] sm:$0xff]
        %v217 = vld [vmem:[%s182 + $0x28] sm:$0xff]
        %v218 = vld [vmem:[%s182 + $0x30] sm:$0xff]
        %v219 = vld [vmem:[%s182 + $0x38] sm:$0xff]
        %v220 = vld [vmem:[%s182 + $0x40] sm:$0xff]
        %v221 = vld [vmem:[%s182 + $0x48] sm:$0xff]
        %v222 = vld [vmem:[%s182 + $0x50] sm:$0xff]
        %v223 = vld [vmem:[%s182 + $0x58] sm:$0xff]
        %v224 = vld [vmem:[%s182 + $0x60] sm:$0xff]
        %v225 = vld [vmem:[%s182 + $0x68] sm:$0xff]
        %v226 = vld [vmem:[%s182 + $0x70] sm:$0xff]
        %v227 = vld [vmem:[%s182 + $0x78] sm:$0xff]
        %v228 = vld [vmem:[%s182 + $0x80] sm:$0xff]
        %v229 = vld [vmem:[%s182 + $0x88] sm:$0xff]
        %v230 = vld [vmem:[%s182 + $0x90] sm:$0xff]
        %v231 = vld [vmem:[%s182 + $0x98] sm:$0xff]
        %v232 = vld [vmem:[%s182 + $0xa0] sm:$0xff]
        %v233 = vld [vmem:[%s182 + $0xa8] sm:$0xff]
        %v234 = vld [vmem:[%s182 + $0xb0] sm:$0xff]
        %v235 = vld [vmem:[%s182 + $0xb8] sm:$0xff]
        %v236 = vld [vmem:[%s182 + $0xc0] sm:$0xff]
        %v237 = vld [vmem:[%s182 + $0xc8] sm:$0xff]
        %v238 = vld [vmem:[%s182 + $0xd0] sm:$0xff]
        %v239 = vld [vmem:[%s182 + $0xd8] sm:$0xff]
        %v240 = vld [vmem:[%s182 + $0xe0] sm:$0xff]
        %v241 = vld [vmem:[%s182 + $0xe8] sm:$0xff]
        %v242 = vld [vmem:[%s182 + $0xf0] sm:$0xff]
        %v243 = vld [vmem:[%s182 + $0xf8] sm:$0xff]
        %v244 = vld [vmem:[%s182 + $0x100] sm:$0xff]
        %v245 = vld [vmem:[%s182 + $0x108] sm:$0xff]
        %v246 = vld [vmem:[%s182 + $0x110] sm:$0xff]
        %v247 = vld [vmem:[%s182 + $0x118] sm:$0xff]
        %v248 = vld [vmem:[%s182 + $0x120] sm:$0xff]
        %v249 = vld [vmem:[%s182 + $0x128] sm:$0xff]
        %v250 = vld [vmem:[%s182 + $0x130] sm:$0xff]
        %v251 = vld [vmem:[%s182 + $0x138] sm:$0xff]
        %v252 = vld [vmem:[%s182 + $0x140] sm:$0xff]
        %v253 = vld [vmem:[%s182 + $0x148] sm:$0xff]
        %v254 = vld [vmem:[%s182 + $0x150] sm:$0xff]
        %v255 = vld [vmem:[%s182 + $0x158] sm:$0xff]
        %v256 = vld [vmem:[%s182 + $0x160] sm:$0xff]
        %v257 = vld [vmem:[%s182 + $0x168] sm:$0xff]
        %v258 = vld [vmem:[%s182 + $0x170] sm:$0xff]
        %v259 = vld [vmem:[%s182 + $0x178] sm:$0xff]
        %v260 = vld [vmem:[%s182 + $0x180] sm:$0xff]
        %v261 = vld [vmem:[%s182 + $0x188] sm:$0xff]
        %v262 = vld [vmem:[%s182 + $0x190] sm:$0xff]
        %v263 = vld [vmem:[%s182 + $0x198] sm:$0xff]
        %v264 = vld [vmem:[%s182 + $0x1a0] sm:$0xff]
        %v265 = vld [vmem:[%s182 + $0x1a8] sm:$0xff]
        %v266 = vld [vmem:[%s182 + $0x1b0] sm:$0xff]
        %v267 = vld [vmem:[%s182 + $0x1b8] sm:$0xff]
        %v268 = vld [vmem:[%s182 + $0x1c0] sm:$0xff]
        %v269 = vld [vmem:[%s182 + $0x1c8] sm:$0xff]
        %v270 = vld [vmem:[%s182 + $0x1d0] sm:$0xff]
        %v271 = vld [vmem:[%s182 + $0x1d8] sm:$0xff]
        %v272 = vld [vmem:[%s182 + $0x1e0] sm:$0xff]
        %v273 = vld [vmem:[%s182 + $0x1e8] sm:$0xff]
        %v274 = vld [vmem:[%s182 + $0x1f0] sm:$0xff]
        %v275 = vld [vmem:[%s182 + $0x1f8] sm:$0xff]
        %v276 = vld [vmem:[#allocation5] sm:$0xff]
        %v277 = vld [vmem:[#allocation5 + $0x8] sm:$0xff]
        %v278 = vld [vmem:[#allocation5 + $0x10] sm:$0xff]
        %v279 = vld [vmem:[#allocation5 + $0x18] sm:$0xff]
        %v280 = vld [vmem:[#allocation5 + $0x20] sm:$0xff]
        %v281 = vld [vmem:[#allocation5 + $0x28] sm:$0xff]
        %v282 = vld [vmem:[#allocation5 + $0x30] sm:$0xff]
        %v283 = vld [vmem:[#allocation5 + $0x38] sm:$0xff]
        %v284 = vld [vmem:[#allocation5 + $0x40] sm:$0xff]
        %v285 = vld [vmem:[#allocation5 + $0x48] sm:$0xff]
        %v286 = vld [vmem:[#allocation5 + $0x50] sm:$0xff]
        %v287 = vld [vmem:[#allocation5 + $0x58] sm:$0xff]
        %v288 = vld [vmem:[#allocation5 + $0x60] sm:$0xff]
        %v289 = vld [vmem:[#allocation5 + $0x68] sm:$0xff]
        %v290 = vld [vmem:[#allocation5 + $0x70] sm:$0xff]
        %v291 = vld [vmem:[#allocation5 + $0x78] sm:$0xff]
        %v292 = vld [vmem:[#allocation5 + $0x80] sm:$0xff]
        %v293 = vld [vmem:[#allocation5 + $0x88] sm:$0xff]
        %v294 = vld [vmem:[#allocation5 + $0x90] sm:$0xff]
        %v295 = vld [vmem:[#allocation5 + $0x98] sm:$0xff]
        %v296 = vld [vmem:[#allocation5 + $0xa0] sm:$0xff]
        %v297 = vld [vmem:[#allocation5 + $0xa8] sm:$0xff]
        %v298 = vld [vmem:[#allocation5 + $0xb0] sm:$0xff]
        %v299 = vld [vmem:[#allocation5 + $0xb8] sm:$0xff]
        %v300 = vld [vmem:[#allocation5 + $0xc0] sm:$0xff]
        %v301 = vld [vmem:[#allocation5 + $0xc8] sm:$0xff]
        %v302 = vld [vmem:[#allocation5 + $0xd0] sm:$0xff]
        %v303 = vld [vmem:[#allocation5 + $0xd8] sm:$0xff]
        %v304 = vld [vmem:[#allocation5 + $0xe0] sm:$0xff]
        %v305 = vld [vmem:[#allocation5 + $0xe8] sm:$0xff]
        %v306 = vld [vmem:[#allocation5 + $0xf0] sm:$0xff]
        %v307 = vld [vmem:[#allocation5 + $0xf8] sm:$0xff]
        %v308 = vld [vmem:[#allocation5 + $0x100] sm:$0xff]
        %v309 = vld [vmem:[#allocation5 + $0x108] sm:$0xff]
        %v310 = vld [vmem:[#allocation5 + $0x110] sm:$0xff]
        %v311 = vld [vmem:[#allocation5 + $0x118] sm:$0xff]
        %v312 = vld [vmem:[#allocation5 + $0x120] sm:$0xff]
        %v313 = vld [vmem:[#allocation5 + $0x128] sm:$0xff]
        %v314 = vld [vmem:[#allocation5 + $0x130] sm:$0xff]
        %v315 = vld [vmem:[#allocation5 + $0x138] sm:$0xff]
        %v316 = vld [vmem:[#allocation5 + $0x140] sm:$0xff]
        %v317 = vld [vmem:[#allocation5 + $0x148] sm:$0xff]
        %v318 = vld [vmem:[#allocation5 + $0x150] sm:$0xff]
        %v319 = vld [vmem:[#allocation5 + $0x158] sm:$0xff]
        %v320 = vld [vmem:[#allocation5 + $0x160] sm:$0xff]
        %v321 = vld [vmem:[#allocation5 + $0x168] sm:$0xff]
        %v322 = vld [vmem:[#allocation5 + $0x170] sm:$0xff]
        %v323 = vld [vmem:[#allocation5 + $0x178] sm:$0xff]
        %v324 = vld [vmem:[#allocation5 + $0x180] sm:$0xff]
        %v325 = vld [vmem:[#allocation5 + $0x188] sm:$0xff]
        %v326 = vld [vmem:[#allocation5 + $0x190] sm:$0xff]
        %v327 = vld [vmem:[#allocation5 + $0x198] sm:$0xff]
        %v328 = vld [vmem:[#allocation5 + $0x1a0] sm:$0xff]
        %v329 = vld [vmem:[#allocation5 + $0x1a8] sm:$0xff]
        %v330 = vld [vmem:[#allocation5 + $0x1b0] sm:$0xff]
        %v331 = vld [vmem:[#allocation5 + $0x1b8] sm:$0xff]
        %v332 = vld [vmem:[#allocation5 + $0x1c0] sm:$0xff]
        %v333 = vld [vmem:[#allocation5 + $0x1c8] sm:$0xff]
        %v334 = vld [vmem:[#allocation5 + $0x1d0] sm:$0xff]
        %v335 = vld [vmem:[#allocation5 + $0x1d8] sm:$0xff]
        %v336 = vld [vmem:[#allocation5 + $0x1e0] sm:$0xff]
        %v337 = vld [vmem:[#allocation5 + $0x1e8] sm:$0xff]
        %v338 = vld [vmem:[#allocation5 + $0x1f0] sm:$0xff]
        %v339 = vld [vmem:[#allocation5 + $0x1f8] sm:$0xff]
        %v340 = vadd.f32 %v212, %v276
        %v341 = vadd.f32 %v213, %v277
        %v342 = vadd.f32 %v214, %v278
        %v343 = vadd.f32 %v215, %v279
        %v344 = vadd.f32 %v216, %v280
        %v345 = vadd.f32 %v217, %v281
        %v346 = vadd.f32 %v218, %v282
        %v347 = vadd.f32 %v219, %v283
        %v348 = vadd.f32 %v220, %v284
        %v349 = vadd.f32 %v221, %v285
        %v350 = vadd.f32 %v222, %v286
        %v351 = vadd.f32 %v223, %v287
        %v352 = vadd.f32 %v224, %v288
        %v353 = vadd.f32 %v225, %v289
        %v354 = vadd.f32 %v226, %v290
        %v355 = vadd.f32 %v227, %v291
        %v356 = vadd.f32 %v228, %v292
        %v357 = vadd.f32 %v229, %v293
        %v358 = vadd.f32 %v230, %v294
        %v359 = vadd.f32 %v231, %v295
        %v360 = vadd.f32 %v232, %v296
        %v361 = vadd.f32 %v233, %v297
        %v362 = vadd.f32 %v234, %v298
        %v363 = vadd.f32 %v235, %v299
        %v364 = vadd.f32 %v236, %v300
        %v365 = vadd.f32 %v237, %v301
        %v366 = vadd.f32 %v238, %v302
        %v367 = vadd.f32 %v239, %v303
        %v368 = vadd.f32 %v240, %v304
        %v369 = vadd.f32 %v241, %v305
        %v370 = vadd.f32 %v242, %v306
        %v371 = vadd.f32 %v243, %v307
        %v372 = vadd.f32 %v244, %v308
        %v373 = vadd.f32 %v245, %v309
        %v374 = vadd.f32 %v246, %v310
        %v375 = vadd.f32 %v247, %v311
        %v376 = vadd.f32 %v248, %v312
        %v377 = vadd.f32 %v249, %v313
        %v378 = vadd.f32 %v250, %v314
        %v379 = vadd.f32 %v251, %v315
        %v380 = vadd.f32 %v252, %v316
        %v381 = vadd.f32 %v253, %v317
        %v382 = vadd.f32 %v254, %v318
        %v383 = vadd.f32 %v255, %v319
        %v384 = vadd.f32 %v256, %v320
        %v385 = vadd.f32 %v257, %v321
        %v386 = vadd.f32 %v258, %v322
        %v387 = vadd.f32 %v259, %v323
        %v388 = vadd.f32 %v260, %v324
        %v389 = vadd.f32 %v261, %v325
        %v390 = vadd.f32 %v262, %v326
        %v391 = vadd.f32 %v263, %v327
        %v392 = vadd.f32 %v264, %v328
        %v393 = vadd.f32 %v265, %v329
        %v394 = vadd.f32 %v266, %v330
        %v395 = vadd.f32 %v267, %v331
        %v396 = vadd.f32 %v268, %v332
        %v397 = vadd.f32 %v269, %v333
        %v398 = vadd.f32 %v270, %v334
        %v399 = vadd.f32 %v271, %v335
        %v400 = vadd.f32 %v272, %v336
        %v401 = vadd.f32 %v273, %v337
        %v402 = vadd.f32 %v274, %v338
        %v403 = vadd.f32 %v275, %v339
        %404 = vst [vmem:[%s208] sm:$0xff] %v340
        %405 = vst [vmem:[%s208 + $0x8] sm:$0xff] %v341
        %406 = vst [vmem:[%s208 + $0x10] sm:$0xff] %v342
        %407 = vst [vmem:[%s208 + $0x18] sm:$0xff] %v343
        %408 = vst [vmem:[%s208 + $0x20] sm:$0xff] %v344
        %409 = vst [vmem:[%s208 + $0x28] sm:$0xff] %v345
        %410 = vst [vmem:[%s208 + $0x30] sm:$0xff] %v346
        %411 = vst [vmem:[%s208 + $0x38] sm:$0xff] %v347
        %412 = vst [vmem:[%s208 + $0x40] sm:$0xff] %v348
        %413 = vst [vmem:[%s208 + $0x48] sm:$0xff] %v349
        %414 = vst [vmem:[%s208 + $0x50] sm:$0xff] %v350
        %415 = vst [vmem:[%s208 + $0x58] sm:$0xff] %v351
        %416 = vst [vmem:[%s208 + $0x60] sm:$0xff] %v352
        %417 = vst [vmem:[%s208 + $0x68] sm:$0xff] %v353
        %418 = vst [vmem:[%s208 + $0x70] sm:$0xff] %v354
        %419 = vst [vmem:[%s208 + $0x78] sm:$0xff] %v355
        %420 = vst [vmem:[%s208 + $0x80] sm:$0xff] %v356
        %421 = vst [vmem:[%s208 + $0x88] sm:$0xff] %v357
        %422 = vst [vmem:[%s208 + $0x90] sm:$0xff] %v358
        %423 = vst [vmem:[%s208 + $0x98] sm:$0xff] %v359
        %424 = vst [vmem:[%s208 + $0xa0] sm:$0xff] %v360
        %425 = vst [vmem:[%s208 + $0xa8] sm:$0xff] %v361
        %426 = vst [vmem:[%s208 + $0xb0] sm:$0xff] %v362
        %427 = vst [vmem:[%s208 + $0xb8] sm:$0xff] %v363
        %428 = vst [vmem:[%s208 + $0xc0] sm:$0xff] %v364
        %429 = vst [vmem:[%s208 + $0xc8] sm:$0xff] %v365
        %430 = vst [vmem:[%s208 + $0xd0] sm:$0xff] %v366
        %431 = vst [vmem:[%s208 + $0xd8] sm:$0xff] %v367
        %432 = vst [vmem:[%s208 + $0xe0] sm:$0xff] %v368
        %433 = vst [vmem:[%s208 + $0xe8] sm:$0xff] %v369
        %434 = vst [vmem:[%s208 + $0xf0] sm:$0xff] %v370
        %435 = vst [vmem:[%s208 + $0xf8] sm:$0xff] %v371
        %436 = vst [vmem:[%s208 + $0x100] sm:$0xff] %v372
        %437 = vst [vmem:[%s208 + $0x108] sm:$0xff] %v373
        %438 = vst [vmem:[%s208 + $0x110] sm:$0xff] %v374
        %439 = vst [vmem:[%s208 + $0x118] sm:$0xff] %v375
        %440 = vst [vmem:[%s208 + $0x120] sm:$0xff] %v376
        %441 = vst [vmem:[%s208 + $0x128] sm:$0xff] %v377
        %442 = vst [vmem:[%s208 + $0x130] sm:$0xff] %v378
        %443 = vst [vmem:[%s208 + $0x138] sm:$0xff] %v379
        %444 = vst [vmem:[%s208 + $0x140] sm:$0xff] %v380
        %445 = vst [vmem:[%s208 + $0x148] sm:$0xff] %v381
        %446 = vst [vmem:[%s208 + $0x150] sm:$0xff] %v382
        %447 = vst [vmem:[%s208 + $0x158] sm:$0xff] %v383
        %448 = vst [vmem:[%s208 + $0x160] sm:$0xff] %v384
        %449 = vst [vmem:[%s208 + $0x168] sm:$0xff] %v385
        %450 = vst [vmem:[%s208 + $0x170] sm:$0xff] %v386
        %451 = vst [vmem:[%s208 + $0x178] sm:$0xff] %v387
        %452 = vst [vmem:[%s208 + $0x180] sm:$0xff] %v388
        %453 = vst [vmem:[%s208 + $0x188] sm:$0xff] %v389
        %454 = vst [vmem:[%s208 + $0x190] sm:$0xff] %v390
        %455 = vst [vmem:[%s208 + $0x198] sm:$0xff] %v391
        %456 = vst [vmem:[%s208 + $0x1a0] sm:$0xff] %v392
        %457 = vst [vmem:[%s208 + $0x1a8] sm:$0xff] %v393
        %458 = vst [vmem:[%s208 + $0x1b0] sm:$0xff] %v394
        %459 = vst [vmem:[%s208 + $0x1b8] sm:$0xff] %v395
        %460 = vst [vmem:[%s208 + $0x1c0] sm:$0xff] %v396
        %461 = vst [vmem:[%s208 + $0x1c8] sm:$0xff] %v397
        %462 = vst [vmem:[%s208 + $0x1d0] sm:$0xff] %v398
        %463 = vst [vmem:[%s208 + $0x1d8] sm:$0xff] %v399
        %464 = vst [vmem:[%s208 + $0x1e0] sm:$0xff] %v400
        %465 = vst [vmem:[%s208 + $0x1e8] sm:$0xff] %v401
        %466 = vst [vmem:[%s208 + $0x1f0] sm:$0xff] %v402
        %467 = vst [vmem:[%s208 + $0x1f8] sm:$0xff] %v403
        %s468 = sand.u32 %s96, 1
        %s469 = scalar_lea.sflag [#allocation4], %s468
        %s470 = sand.u32 %s96, 1
        %s471 = smul.addr %s470, 512
        %s472 = scalar_lea.vmem [#allocation7], %s471
        // Predicated region
        $region37: #{tpu_custom_call.1} parent=27 // pred_check
          %p473 = pneg %p106
        $region38: #{tpu_custom_call.1} parent=27 // pred_check_branch
          %475 = sbr.rel (%p473) target = $region40
        $region39: #{tpu_custom_call.1} parent=27 // pred_region
          %s476 = smul.u32 4, %s24
          %478 = vsyncadd %s469, 0
          %s479 = smul.addr %s476, 16
          %s480 = smul.addr %s25, 64
          %s481 = sadd.s32 %s479, %s480
          %s482 = smul.addr %s481, 8
          %s483 = scalar_lea.hbm %s2, %s482
          %s484 = sshll.u32 %s472, 4
          %s485 = int_to_ptr.vmem [resolvable:$true] %s484
          %s486 = sshll.u32 %s483, 4
          %s487 = int_to_ptr.hbm [resolvable:$true] %s486
          %492 = dma.vmem_to_hbm [thread:$0]  %s485, 8192, %s487, %s469, 128, 128, 8
        $region40: #{tpu_custom_call.1} parent=27 // pred_fallthru
          _
      $region28: #{tpu_custom_call.1} parent=5 // pred_fallthru
        _
      %p493 = scmp.le.s32.totalorder 2, %s15
      // Predicated region
      $region41: #{tpu_custom_call.1} parent=5 // pred_check
        %p494 = pneg %p493
      $region42: #{tpu_custom_call.1} parent=5 // pred_check_branch
        %496 = sbr.rel (%p494) target = $region44
      $region43: #{tpu_custom_call.1} parent=5 // pred_region
        %s497 = ssub.s32 %s15, 2
        // Predicated region
        $region45: #{tpu_custom_call.1} parent=43 // pred_check
          %p498 = pneg %p112
        $region46: #{tpu_custom_call.1} parent=43 // pred_check_branch
          %500 = sbr.rel (%p498) target = $region48
        $region47: #{tpu_custom_call.1} parent=43 // pred_region
          %s501 = sand.u32 %s97, 1
          %s502 = scalar_lea.sflag [#allocation4], %s501
          %s503 = sand.u32 %s97, 1
          %s504 = smul.addr %s503, 512
          %s505 = scalar_lea.vmem [#allocation7], %s504
          %507 = dma.done %s502, 8192
        $region48: #{tpu_custom_call.1} parent=43 // pred_fallthru
          _
      $region44: #{tpu_custom_call.1} parent=5 // pred_fallthru
        _
    $region6: #{tpu_custom_call.1} parent=1 // loop_footer
      %s19 = sadd.s32 1, %s15
    $region7: #{tpu_custom_call.1} parent=1 // loop_footer_branch
      %14 = sbr.rel target = $region3
    $region8: #{tpu_custom_call.1} parent=1 // loop_exit
      _
    %508 = vsyncpa [#allocation3], 1
    %s509 = scalar_lea.sflag [#allocation3], 1
    %510 = vsyncpa %s509, 1
    %511 = vsyncpa [#allocation6], 1
    %512 = vsyncpa [#allocation4], 1
    %s513 = scalar_lea.sflag [#allocation4], 1
    %514 = vsyncpa %s513, 1

</llo_original>
